<compile_context>
chip_gen: v7x
topology: tpu7x:2x2x1
jax: 0.10.0
libtpu: 0.0.40
codegen_flags: <defaults>
</compile_context>

<pallas_src>
import math

import jax
import jax.numpy as jnp
from jax.experimental import pallas as pl
from jax.experimental.pallas import tpu as pltpu


def encoder_kernel(w_ref, a_ref, b_ref, out_ref):
    """One grid step: a (block_m, N, tK) tile of relu(conv1d(mixture)).

    w_ref  : [N, L]         conv filter bank (single fused weight operand)
    a_ref  : [Mb, hop, tK]  chunk k   of each frame (hop-major, frames on lanes)
    b_ref  : [Mb, hop, tK]  chunk k+1 of each frame
    out_ref: [Mb, N, tK]    output tile already in the PyTorch [M, N, K] layout
    """
    w = w_ref[...]                                                   # [N, L]
    for m in range(a_ref.shape[0]):                                  # Mb small & static
        frames = jnp.concatenate([a_ref[m], b_ref[m]], axis=0)       # [L, tK]
        y = jnp.dot(w, frames, preferred_element_type=jnp.float32)   # [N, tK] (MXU)
        out_ref[m] = jnp.maximum(y, 0.0).astype(out_ref.dtype)       # relu + single store


def _choose_tiles(M, N, K, hop, itemsize, vmem_budget_bytes=20 * 1024 * 1024):
    """Pick (block_m, tK) so double-buffered blocks fit comfortably in scoped VMEM."""
    block_m = min(M, 8)
    while M % block_m:
        block_m -= 1

    def step_bytes(t):
        # double-buffered: one output block + two input blocks per step
        return 2 * block_m * (N + 2 * hop) * t * itemsize

    tk = min(K, 2048)
    while tk > 128 and step_bytes(tk) > vmem_budget_bytes:
        tk //= 2
    return block_m, tk


def encoder_forward(mixture, weight, L):
    """mixture: [M, T]; weight: [N, 1, L] (torch Conv1d weight). Returns [M, N, K]."""
    M, T = mixture.shape
    N = weight.shape[0]
    assert weight.shape == (N, 1, L)
    assert L % 2 == 0, "stride = L // 2 fast path assumes even L"
    hop = L // 2
    K = (T - L) // hop + 1
    assert K >= 1, "input too short for one frame"

    # Frame the (small) input: hop-sized chunks, frames on the lane axis.
    usable = (K + 1) * hop                          # == (K - 1) * hop + L
    x = mixture[:, :usable].reshape(M, K + 1, hop)  # free reshape (contiguous)
    xt = jnp.transpose(x, (0, 2, 1))                # [M, hop, K+1]  (tiny vs output)
    a_in = xt[:, :, :K]                             # chunk k   of frame k
    b_in = xt[:, :, 1:]                             # chunk k+1 of frame k
    w = weight.reshape(N, L)                        # single fused weight operand

    block_m, tk = _choose_tiles(M, N, K, hop, jnp.dtype(mixture.dtype).itemsize)
    grid = (M // block_m, pl.cdiv(K, tk))

    return pl.pallas_call(
        encoder_kernel,
        out_shape=jax.ShapeDtypeStruct((M, N, K), mixture.dtype),
        grid=grid,
        in_specs=[
            pl.BlockSpec((N, L), lambda i, j: (0, 0)),                 # weight: fetched once
            pl.BlockSpec((block_m, hop, tk), lambda i, j: (i, 0, j)),  # A chunks
            pl.BlockSpec((block_m, hop, tk), lambda i, j: (i, 0, j)),  # B chunks
        ],
        out_specs=pl.BlockSpec((block_m, N, tk), lambda i, j: (i, 0, j)),
        compiler_params=pltpu.CompilerParams(
            dimension_semantics=("parallel", "parallel"),
            vmem_limit_bytes=32 * 1024 * 1024,
        ),
    )(w, a_in, b_in)


def encoder_reference(mixture, weight, L):
    """Pure-JAX reference mirroring the PyTorch Encoder forward (for validation)."""
    M, T = mixture.shape
    hop = L // 2
    K = (T - L) // hop + 1
    idx = jnp.arange(K)[:, None] * hop + jnp.arange(L)[None, :]   # [K, L]
    frames = mixture[:, idx]                                      # [M, K, L]
    y = jnp.einsum("mkl,nl->mnk", frames, weight[:, 0, :])        # [M, N, K]
    return jnp.maximum(y, 0.0)


if __name__ == "__main__":
    # Small shapes consistent with the Encoder forward.
    M, N, L, K = 2, 64, 32, 16
    hop = L // 2
    T = (K + 1) * hop          # 272 samples -> K = 16 frames

    key = jax.random.PRNGKey(0)
    k1, k2 = jax.random.split(key)
    mixture = jax.random.normal(k1, (M, T), jnp.float32)
    # nn.Conv1d(1, N, L, bias=False) weight: [N, 1, L]; deterministic synthetic init.
    bound = 1.0 / math.sqrt(1 * L)
    weight = jax.random.uniform(k2, (N, 1, L), jnp.float32, -bound, bound)

    out = encoder_forward(mixture, weight, L)
    out = jax.block_until_ready(out)

    ref = encoder_reference(mixture, weight, L)
    assert out.shape == (M, N, K), out.shape
    assert jnp.allclose(out, ref, rtol=1e-5, atol=1e-5), float(jnp.max(jnp.abs(out - ref)))

    print("KERNEL_OK")
</pallas_src>

<mosaic_0001>
module attributes {stable_mosaic.version = 11 : i64} {
  func.func @encoder_kernel(%arg0: i32, %arg1: i32, %arg2: memref<64x32xf32, #tpu.memory_space<vmem>>, %arg3: memref<2x16x16xf32, #tpu.memory_space<vmem>>, %arg4: memref<2x16x16xf32, #tpu.memory_space<vmem>>, %arg5: memref<2x64x16xf32, #tpu.memory_space<vmem>>) attributes {dimension_semantics = [#tpu.dimension_semantics<parallel>, #tpu.dimension_semantics<parallel>], iteration_bounds = array<i64: 1, 1>, scalar_prefetch = 0 : i64, scratch_operands = 0 : i64, tpu.core_type = #tpu.core_type<tc>, window_params = [{pipeline_mode = #tpu.pipeline_mode<synchronous>, transform_indices = @transform_0, window_bounds = array<i64: 64, 32>}, {transform_indices = @transform_1, window_bounds = array<i64: 2, 16, 16>}, {transform_indices = @transform_2, window_bounds = array<i64: 2, 16, 16>}, {transform_indices = @transform_3, window_bounds = array<i64: 2, 64, 16>}]} {
    %c0 = arith.constant 0 : index
    %c0_0 = arith.constant 0 : index
    %0 = vector.load %arg2[%c0, %c0_0] : memref<64x32xf32, #tpu.memory_space<vmem>>, vector<64x32xf32>
    %c0_1 = arith.constant 0 : index
    %c0_2 = arith.constant 0 : index
    %c0_3 = arith.constant 0 : index
    %1 = vector.load %arg3[%c0_1, %c0_2, %c0_3] : memref<2x16x16xf32, #tpu.memory_space<vmem>>, vector<1x16x16xf32>
    %2 = vector.shape_cast %1 : vector<1x16x16xf32> to vector<16x16xf32>
    %c0_4 = arith.constant 0 : index
    %c0_5 = arith.constant 0 : index
    %c0_6 = arith.constant 0 : index
    %3 = vector.load %arg4[%c0_4, %c0_5, %c0_6] : memref<2x16x16xf32, #tpu.memory_space<vmem>>, vector<1x16x16xf32>
    %4 = vector.shape_cast %3 : vector<1x16x16xf32> to vector<16x16xf32>
    %5 = tpu.concatenate %2, %4 in 0 : vector<16x16xf32>, vector<16x16xf32> -> vector<32x16xf32>
    %cst = arith.constant dense<0.000000e+00> : vector<64x16xf32>
    %6 = tpu.matmul %0, %5, %cst {dimension_numbers = #tpu.dot_dimension_numbers<[1], [0], [0], [1], [0, 0, 1, 1], [], []>} : vector<64x32xf32>, vector<32x16xf32>, vector<64x16xf32> -> vector<64x16xf32>
    %cst_7 = arith.constant 0.000000e+00 : f32
    %7 = vector.broadcast %cst_7 : f32 to vector<64x16xf32>
    %8 = arith.maximumf %6, %7 : vector<64x16xf32>
    %c0_8 = arith.constant 0 : index
    %c0_9 = arith.constant 0 : index
    %c0_10 = arith.constant 0 : index
    %9 = vector.load %arg5[%c0_8, %c0_9, %c0_10] : memref<2x64x16xf32, #tpu.memory_space<vmem>>, vector<1x64x16xf32>
    %10 = vector.shape_cast %9 : vector<1x64x16xf32> to vector<64x16xf32>
    %11 = vector.shape_cast %8 : vector<64x16xf32> to vector<1x64x16xf32>
    tpu.vector_store %arg5[%c0_8, %c0_9, %c0_10], %11 {strides = array<i32>} : memref<2x64x16xf32, #tpu.memory_space<vmem>>, vector<1x64x16xf32>,
    %c1 = arith.constant 1 : index
    %c0_11 = arith.constant 0 : index
    %c0_12 = arith.constant 0 : index
    %12 = vector.load %arg3[%c1, %c0_11, %c0_12] : memref<2x16x16xf32, #tpu.memory_space<vmem>>, vector<1x16x16xf32>
    %13 = vector.shape_cast %12 : vector<1x16x16xf32> to vector<16x16xf32>
    %c1_13 = arith.constant 1 : index
    %c0_14 = arith.constant 0 : index
    %c0_15 = arith.constant 0 : index
    %14 = vector.load %arg4[%c1_13, %c0_14, %c0_15] : memref<2x16x16xf32, #tpu.memory_space<vmem>>, vector<1x16x16xf32>
    %15 = vector.shape_cast %14 : vector<1x16x16xf32> to vector<16x16xf32>
    %16 = tpu.concatenate %13, %15 in 0 : vector<16x16xf32>, vector<16x16xf32> -> vector<32x16xf32>
    %cst_16 = arith.constant dense<0.000000e+00> : vector<64x16xf32>
    %17 = tpu.matmul %0, %16, %cst_16 {dimension_numbers = #tpu.dot_dimension_numbers<[1], [0], [0], [1], [0, 0, 1, 1], [], []>} : vector<64x32xf32>, vector<32x16xf32>, vector<64x16xf32> -> vector<64x16xf32>
    %cst_17 = arith.constant 0.000000e+00 : f32
    %18 = vector.broadcast %cst_17 : f32 to vector<64x16xf32>
    %19 = arith.maximumf %17, %18 : vector<64x16xf32>
    %c1_18 = arith.constant 1 : index
    %c0_19 = arith.constant 0 : index
    %c0_20 = arith.constant 0 : index
    %20 = vector.load %arg5[%c1_18, %c0_19, %c0_20] : memref<2x64x16xf32, #tpu.memory_space<vmem>>, vector<1x64x16xf32>
    %21 = vector.shape_cast %20 : vector<1x64x16xf32> to vector<64x16xf32>
    %22 = vector.shape_cast %19 : vector<64x16xf32> to vector<1x64x16xf32>
    tpu.vector_store %arg5[%c1_18, %c0_19, %c0_20], %22 {strides = array<i32>} : memref<2x64x16xf32, #tpu.memory_space<vmem>>, vector<1x64x16xf32>,
    return
  }
  func.func @transform_0(%arg0: i32, %arg1: i32) -> (i32, i32) {
    %c0_i32 = arith.constant 0 : i32
    %c0_i32_0 = arith.constant 0 : i32
    %c0_i32_1 = arith.constant 0 : i32
    return %c0_i32, %c0_i32_0 : i32, i32
  }
  func.func @transform_1(%arg0: i32, %arg1: i32) -> (i32, i32, i32) {
    %c0_i32 = arith.constant 0 : i32
    %c0_i32_0 = arith.constant 0 : i32
    return %arg0, %c0_i32, %arg1 : i32, i32, i32
  }
  func.func @transform_2(%arg0: i32, %arg1: i32) -> (i32, i32, i32) {
    %c0_i32 = arith.constant 0 : i32
    %c0_i32_0 = arith.constant 0 : i32
    return %arg0, %c0_i32, %arg1 : i32, i32, i32
  }
  func.func @transform_3(%arg0: i32, %arg1: i32) -> (i32, i32, i32) {
    %c0_i32 = arith.constant 0 : i32
    %c0_i32_0 = arith.constant 0 : i32
    return %arg0, %c0_i32, %arg1 : i32, i32, i32
  }
}

</mosaic_0001>

<llo_original>
// kernel: tpu_custom_call.1
$region0: #{tpu_custom_call.1}
  #allocation0 [shape = 'u32[]', space=smem, size = 0x4, offset = 0x4, fixed_abs, tag = 'smem constant byte address 0x4 - core index']
  #allocation1 [shape = 'u32[144,128]{1,0:T(1,128)}', space=vmem, size = 0x12000, scoped, tag = 'internal scratch']
  %s0 = inlined_call_operand.vmem [shape: f32[64,32], index: 0, kind: input, shape index: {}]
  %s1 = inlined_call_operand.vmem [shape: f32[2,16,16], index: 1, kind: input, shape index: {}]
  %s2 = inlined_call_operand.vmem [shape: f32[2,16,16], index: 2, kind: input, shape index: {}]
  %s3 = inlined_call_operand.vmem [shape: f32[2,64,16], index: 3, kind: output, shape index: {}]
  %s4 = sld [smem:[#allocation0]]
  $region22: #{tpu_custom_call.1} parent=0
    _
  %s6 = ssub.s32 1, %s4
  %s7 = scalar_select 0, %s6, %s4
  // Predicated region
  $region2: #{tpu_custom_call.1} parent=0 // pred_check
    _
  $region3: #{tpu_custom_call.1} parent=0 // pred_check_branch
    %9 = sbr.rel (0) target = $region5
  $region4: #{tpu_custom_call.1} parent=0 // pred_region
    _
  $region5: #{tpu_custom_call.1} parent=0 // pred_fallthru
    _
  // Predicated region
  $region6: #{tpu_custom_call.1} parent=0 // pred_check
    _
  $region7: #{tpu_custom_call.1} parent=0 // pred_check_branch
    %11 = sbr.rel (0) target = $region9
  $region8: #{tpu_custom_call.1} parent=0 // pred_region
    _
  $region9: #{tpu_custom_call.1} parent=0 // pred_fallthru
    _
  // Predicated region
  $region10: #{tpu_custom_call.1} parent=0 // pred_check
    _
  $region11: #{tpu_custom_call.1} parent=0 // pred_check_branch
    %13 = sbr.rel (0) target = $region13
  $region12: #{tpu_custom_call.1} parent=0 // pred_region
    _
  $region13: #{tpu_custom_call.1} parent=0 // pred_fallthru
    _
  %v14 = vld [vmem:[%s0] sm:$0xff]
  %v15 = vld [vmem:[%s0 + $0x8] sm:$0xff]
  %v16 = vld [vmem:[%s0 + $0x10] sm:$0xff]
  %v17 = vld [vmem:[%s0 + $0x18] sm:$0xff]
  %v18 = vld [vmem:[%s0 + $0x20] sm:$0xff]
  %v19 = vld [vmem:[%s0 + $0x28] sm:$0xff]
  %v20 = vld [vmem:[%s0 + $0x30] sm:$0xff]
  %v21 = vld [vmem:[%s0 + $0x38] sm:$0xff]
  %v22 = vld [vmem:[%s1] sm:$0xff]
  %v23 = vld [vmem:[%s1 + $0x8] sm:$0xff]
  %v24 = vld [vmem:[%s2] sm:$0xff]
  %v25 = vld [vmem:[%s2 + $0x8] sm:$0xff]
  %vm26 = vcmask 261120
  %v28 = vsel %vm26, %v14, 0
  %v31 = vsel %vm26, %v15, 0
  %v34 = vsel %vm26, %v16, 0
  %v37 = vsel %vm26, %v17, 0
  %v40 = vsel %vm26, %v18, 0
  %v43 = vsel %vm26, %v19, 0
  %v46 = vsel %vm26, %v20, 0
  %v49 = vsel %vm26, %v21, 0
  %51 = vmatprep.subr.mxu0 0.0
  %52 = vmatpush1.msra.mxu0 %v22
  %53 = vmatprep.subr.mxu0 0.0
  %54 = vmatpush1.msra.mxu0 %v23
  %55 = vmatprep.subr.mxu0 0.0
  %56 = vmatpush1.msra.mxu0 %v24
  %57 = vmatprep.subr.mxu0 0.0
  %58 = vmatpush1.msra.mxu0 %v25
  %59 = vmatprep.subr.mxu0 0.0
  %60 = vmatpush1.msra.mxu0 0.0
  %61 = vmatprep.subr.mxu0 0.0
  %62 = vmatpush1.msra.mxu0 0.0
  %63 = vmatprep.subr.mxu0 0.0
  %64 = vmatpush1.msra.mxu0 0.0
  %65 = vmatprep.subr.mxu0 0.0
  %66 = vmatpush1.msra.mxu0 0.0
  %67 = vmatprep.subr.mxu0 0.0
  %68 = vmatpush1.msra.mxu0 0.0
  %69 = vmatprep.subr.mxu0 0.0
  %70 = vmatpush1.msra.mxu0 0.0
  %71 = vmatprep.subr.mxu0 0.0
  %72 = vmatpush1.msra.mxu0 0.0
  %73 = vmatprep.subr.mxu0 0.0
  %74 = vmatpush1.msra.mxu0 0.0
  %75 = vmatprep.subr.mxu0 0.0
  %76 = vmatpush1.msra.mxu0 0.0
  %77 = vmatprep.subr.mxu0 0.0
  %78 = vmatpush1.msra.mxu0 0.0
  %79 = vmatprep.subr.mxu0 0.0
  %80 = vmatpush1.msra.mxu0 0.0
  %81 = vmatprep.subr.mxu0 0.0
  %82 = vmatpush1.msra.mxu0 0.0
  %83 = vmatprep.subr.mxu0 0.0
  %84 = vmatpush1.msra.mxu0 0.0
  %85 = vmatprep.subr.mxu0 0.0
  %86 = vmatpush1.msra.mxu0 0.0
  %87 = vmatprep.subr.mxu0 0.0
  %88 = vmatpush1.msra.mxu0 0.0
  %89 = vmatprep.subr.mxu0 0.0
  %90 = vmatpush1.msra.mxu0 0.0
  %91 = vmatprep.subr.mxu0 0.0
  %92 = vmatpush1.msra.mxu0 0.0
  %93 = vmatprep.subr.mxu0 0.0
  %94 = vmatpush1.msra.mxu0 0.0
  %95 = vmatprep.subr.mxu0 0.0
  %96 = vmatpush1.msra.mxu0 0.0
  %97 = vmatprep.subr.mxu0 0.0
  %98 = vmatpush1.msra.mxu0 0.0
  %99 = vmatprep.subr.mxu0 0.0
  %100 = vmatpush1.msra.mxu0 0.0
  %101 = vmatprep.subr.mxu0 0.0
  %102 = vmatpush1.msra.mxu0 0.0
  %103 = vmatprep.subr.mxu0 0.0
  %104 = vmatpush1.msra.mxu0 0.0
  %105 = vmatprep.subr.mxu0 0.0
  %106 = vmatpush1.msra.mxu0 0.0
  %107 = vmatprep.subr.mxu0 0.0
  %108 = vmatpush1.msra.mxu0 0.0
  %109 = vmatprep.subr.mxu0 0.0
  %110 = vmatpush1.msra.mxu0 0.0
  %111 = vmatprep.subr.mxu0 0.0
  %112 = vmatpush1.msra.mxu0 0.0
  %113 = vmatprep.subr.mxu0 0.0
  %114 = vmatpush1.msra.mxu0 0.0
  %115 = vmatprep.mubr.f32.mxu0 0.0
  %116 = vmatmul.mubr.f32.gmra.mrb[0].mxu0 %v28
  %v117 = vpop.f32.mrb[0].mxu0
  %v118 = vadd.f32 0.0, %v117
  %v119 = vpop.f32.mrb[0].mxu0
  %120 = vmatprep.mubr.f32.mxu0 0.0
  %121 = vmatmul.mubr.f32.gmra.mrb[0].mxu0 %v31
  %v122 = vpop.f32.mrb[0].mxu0
  %v123 = vadd.f32 0.0, %v122
  %v124 = vpop.f32.mrb[0].mxu0
  %125 = vmatprep.mubr.f32.mxu0 0.0
  %126 = vmatmul.mubr.f32.gmra.mrb[0].mxu0 %v34
  %v127 = vpop.f32.mrb[0].mxu0
  %v128 = vadd.f32 0.0, %v127
  %v129 = vpop.f32.mrb[0].mxu0
  %130 = vmatprep.mubr.f32.mxu0 0.0
  %131 = vmatmul.mubr.f32.gmra.mrb[0].mxu0 %v37
  %v132 = vpop.f32.mrb[0].mxu0
  %v133 = vadd.f32 0.0, %v132
  %v134 = vpop.f32.mrb[0].mxu0
  %135 = vmatprep.mubr.f32.mxu0 0.0
  %136 = vmatmul.mubr.f32.gmra.mrb[0].mxu0 %v40
  %v137 = vpop.f32.mrb[0].mxu0
  %v138 = vadd.f32 0.0, %v137
  %v139 = vpop.f32.mrb[0].mxu0
  %140 = vmatprep.mubr.f32.mxu0 0.0
  %141 = vmatmul.mubr.f32.gmra.mrb[0].mxu0 %v43
  %v142 = vpop.f32.mrb[0].mxu0
  %v143 = vadd.f32 0.0, %v142
  %v144 = vpop.f32.mrb[0].mxu0
  %145 = vmatprep.mubr.f32.mxu0 0.0
  %146 = vmatmul.mubr.f32.gmra.mrb[0].mxu0 %v46
  %v147 = vpop.f32.mrb[0].mxu0
  %v148 = vadd.f32 0.0, %v147
  %v149 = vpop.f32.mrb[0].mxu0
  %150 = vmatprep.mubr.f32.mxu0 0.0
  %151 = vmatmul.mubr.f32.gmra.mrb[0].mxu0 %v49
  %v152 = vpop.f32.mrb[0].mxu0
  %v153 = vadd.f32 0.0, %v152
  %v154 = vpop.f32.mrb[0].mxu0
  %155 = vdwg.mxu0
  %v156 = vmax.f32 %v118, 0.0
  %v157 = vmax.f32 %v123, 0.0
  %v158 = vmax.f32 %v128, 0.0
  %v159 = vmax.f32 %v133, 0.0
  %v160 = vmax.f32 %v138, 0.0
  %v161 = vmax.f32 %v143, 0.0
  %v162 = vmax.f32 %v148, 0.0
  %v163 = vmax.f32 %v153, 0.0
  %vm164 = vcmask 130048
  %165 = vst.msk [vmem:[%s3] sm:$0xff] %vm164, %v156
  %166 = vst.msk [vmem:[%s3 + $0x8] sm:$0xff] %vm164, %v157
  %167 = vst.msk [vmem:[%s3 + $0x10] sm:$0xff] %vm164, %v158
  %168 = vst.msk [vmem:[%s3 + $0x18] sm:$0xff] %vm164, %v159
  %169 = vst.msk [vmem:[%s3 + $0x20] sm:$0xff] %vm164, %v160
  %170 = vst.msk [vmem:[%s3 + $0x28] sm:$0xff] %vm164, %v161
  %171 = vst.msk [vmem:[%s3 + $0x30] sm:$0xff] %vm164, %v162
  %172 = vst.msk [vmem:[%s3 + $0x38] sm:$0xff] %vm164, %v163
  %s173 = scalar_lea.vmem %s1, 16
  %v174 = vld [vmem:[%s173] sm:$0xff]
  %v175 = vld [vmem:[%s173 + $0x8] sm:$0xff]
  %s176 = scalar_lea.vmem %s2, 16
  %v177 = vld [vmem:[%s176] sm:$0xff]
  %v178 = vld [vmem:[%s176 + $0x8] sm:$0xff]
  %179 = vmatprep.subr.mxu0 0.0
  %180 = vmatpush1.msra.mxu0 %v174
  %181 = vmatprep.subr.mxu0 0.0
  %182 = vmatpush1.msra.mxu0 %v175
  %183 = vmatprep.subr.mxu0 0.0
  %184 = vmatpush1.msra.mxu0 %v177
  %185 = vmatprep.subr.mxu0 0.0
  %186 = vmatpush1.msra.mxu0 %v178
  %187 = vmatprep.subr.mxu0 0.0
  %188 = vmatpush1.msra.mxu0 0.0
  %189 = vmatprep.subr.mxu0 0.0
  %190 = vmatpush1.msra.mxu0 0.0
  %191 = vmatprep.subr.mxu0 0.0
  %192 = vmatpush1.msra.mxu0 0.0
  %193 = vmatprep.subr.mxu0 0.0
  %194 = vmatpush1.msra.mxu0 0.0
  %195 = vmatprep.subr.mxu0 0.0
  %196 = vmatpush1.msra.mxu0 0.0
  %197 = vmatprep.subr.mxu0 0.0
  %198 = vmatpush1.msra.mxu0 0.0
  %199 = vmatprep.subr.mxu0 0.0
  %200 = vmatpush1.msra.mxu0 0.0
  %201 = vmatprep.subr.mxu0 0.0
  %202 = vmatpush1.msra.mxu0 0.0
  %203 = vmatprep.subr.mxu0 0.0
  %204 = vmatpush1.msra.mxu0 0.0
  %205 = vmatprep.subr.mxu0 0.0
  %206 = vmatpush1.msra.mxu0 0.0
  %207 = vmatprep.subr.mxu0 0.0
  %208 = vmatpush1.msra.mxu0 0.0
  %209 = vmatprep.subr.mxu0 0.0
  %210 = vmatpush1.msra.mxu0 0.0
  %211 = vmatprep.subr.mxu0 0.0
  %212 = vmatpush1.msra.mxu0 0.0
  %213 = vmatprep.subr.mxu0 0.0
  %214 = vmatpush1.msra.mxu0 0.0
  %215 = vmatprep.subr.mxu0 0.0
  %216 = vmatpush1.msra.mxu0 0.0
  %217 = vmatprep.subr.mxu0 0.0
  %218 = vmatpush1.msra.mxu0 0.0
  %219 = vmatprep.subr.mxu0 0.0
  %220 = vmatpush1.msra.mxu0 0.0
  %221 = vmatprep.subr.mxu0 0.0
  %222 = vmatpush1.msra.mxu0 0.0
  %223 = vmatprep.subr.mxu0 0.0
  %224 = vmatpush1.msra.mxu0 0.0
  %225 = vmatprep.subr.mxu0 0.0
  %226 = vmatpush1.msra.mxu0 0.0
  %227 = vmatprep.subr.mxu0 0.0
  %228 = vmatpush1.msra.mxu0 0.0
  %229 = vmatprep.subr.mxu0 0.0
  %230 = vmatpush1.msra.mxu0 0.0
  %231 = vmatprep.subr.mxu0 0.0
  %232 = vmatpush1.msra.mxu0 0.0
  %233 = vmatprep.subr.mxu0 0.0
  %234 = vmatpush1.msra.mxu0 0.0
  %235 = vmatprep.subr.mxu0 0.0
  %236 = vmatpush1.msra.mxu0 0.0
  %237 = vmatprep.subr.mxu0 0.0
  %238 = vmatpush1.msra.mxu0 0.0
  %239 = vmatprep.subr.mxu0 0.0
  %240 = vmatpush1.msra.mxu0 0.0
  %241 = vmatprep.subr.mxu0 0.0
  %242 = vmatpush1.msra.mxu0 0.0
  %243 = vmatprep.mubr.f32.mxu0 0.0
  %244 = vmatmul.mubr.f32.gmra.mrb[0].mxu0 %v28
  %v245 = vpop.f32.mrb[0].mxu0
  %v246 = vadd.f32 0.0, %v245
  %v247 = vpop.f32.mrb[0].mxu0
  %248 = vmatprep.mubr.f32.mxu0 0.0
  %249 = vmatmul.mubr.f32.gmra.mrb[0].mxu0 %v31
  %v250 = vpop.f32.mrb[0].mxu0
  %v251 = vadd.f32 0.0, %v250
  %v252 = vpop.f32.mrb[0].mxu0
  %253 = vmatprep.mubr.f32.mxu0 0.0
  %254 = vmatmul.mubr.f32.gmra.mrb[0].mxu0 %v34
  %v255 = vpop.f32.mrb[0].mxu0
  %v256 = vadd.f32 0.0, %v255
  %v257 = vpop.f32.mrb[0].mxu0
  %258 = vmatprep.mubr.f32.mxu0 0.0
  %259 = vmatmul.mubr.f32.gmra.mrb[0].mxu0 %v37
  %v260 = vpop.f32.mrb[0].mxu0
  %v261 = vadd.f32 0.0, %v260
  %v262 = vpop.f32.mrb[0].mxu0
  %263 = vmatprep.mubr.f32.mxu0 0.0
  %264 = vmatmul.mubr.f32.gmra.mrb[0].mxu0 %v40
  %v265 = vpop.f32.mrb[0].mxu0
  %v266 = vadd.f32 0.0, %v265
  %v267 = vpop.f32.mrb[0].mxu0
  %268 = vmatprep.mubr.f32.mxu0 0.0
  %269 = vmatmul.mubr.f32.gmra.mrb[0].mxu0 %v43
  %v270 = vpop.f32.mrb[0].mxu0
  %v271 = vadd.f32 0.0, %v270
  %v272 = vpop.f32.mrb[0].mxu0
  %273 = vmatprep.mubr.f32.mxu0 0.0
  %274 = vmatmul.mubr.f32.gmra.mrb[0].mxu0 %v46
  %v275 = vpop.f32.mrb[0].mxu0
  %v276 = vadd.f32 0.0, %v275
  %v277 = vpop.f32.mrb[0].mxu0
  %278 = vmatprep.mubr.f32.mxu0 0.0
  %279 = vmatmul.mubr.f32.gmra.mrb[0].mxu0 %v49
  %v280 = vpop.f32.mrb[0].mxu0
  %v281 = vadd.f32 0.0, %v280
  %v282 = vpop.f32.mrb[0].mxu0
  %283 = vdwg.mxu0
  %v284 = vmax.f32 %v246, 0.0
  %v285 = vmax.f32 %v251, 0.0
  %v286 = vmax.f32 %v256, 0.0
  %v287 = vmax.f32 %v261, 0.0
  %v288 = vmax.f32 %v266, 0.0
  %v289 = vmax.f32 %v271, 0.0
  %v290 = vmax.f32 %v276, 0.0
  %v291 = vmax.f32 %v281, 0.0
  %s292 = scalar_lea.vmem %s3, 64
  %293 = vst.msk [vmem:[%s292] sm:$0xff] %vm164, %v284
  %294 = vst.msk [vmem:[%s292 + $0x8] sm:$0xff] %vm164, %v285
  %295 = vst.msk [vmem:[%s292 + $0x10] sm:$0xff] %vm164, %v286
  %296 = vst.msk [vmem:[%s292 + $0x18] sm:$0xff] %vm164, %v287
  %297 = vst.msk [vmem:[%s292 + $0x20] sm:$0xff] %vm164, %v288
  %298 = vst.msk [vmem:[%s292 + $0x28] sm:$0xff] %vm164, %v289
  %299 = vst.msk [vmem:[%s292 + $0x30] sm:$0xff] %vm164, %v290
  %300 = vst.msk [vmem:[%s292 + $0x38] sm:$0xff] %vm164, %v291
  // Predicated region
  $region14: #{tpu_custom_call.1} parent=0 // pred_check
    _
  $region15: #{tpu_custom_call.1} parent=0 // pred_check_branch
    %302 = sbr.rel (0) target = $region17
  $region16: #{tpu_custom_call.1} parent=0 // pred_region
    _
  $region17: #{tpu_custom_call.1} parent=0 // pred_fallthru
    _
  // Predicated region
  $region18: #{tpu_custom_call.1} parent=0 // pred_check
    _
  $region19: #{tpu_custom_call.1} parent=0 // pred_check_branch
    %304 = sbr.rel (0) target = $region21
  $region20: #{tpu_custom_call.1} parent=0 // pred_region
    _
  $region21: #{tpu_custom_call.1} parent=0 // pred_fallthru
    _

</llo_original>
